<compile_context>
chip_gen: v7x
topology: tpu7x:2x2x1
jax: 0.10.0
libtpu: 0.0.40
codegen_flags: <defaults>
</compile_context>

<pallas_src>
import functools

import jax
import jax.numpy as jnp
from jax import lax
from jax.experimental import pallas as pl
from jax.experimental.pallas import tpu as pltpu


def _listnet_rowblock_kernel(t_ref, s_ref, part_ref, *, n):
    """Computes sum_{rows in this block} sum_j q_ij * p_ij (unnormalized by N)."""
    i = pl.program_id(0)
    tm = t_ref.shape[0]

    t = t_ref[...].astype(jnp.float32)   # (tm, n)
    s = s_ref[...].astype(jnp.float32)   # (tm, n)

    # Diagonal mask for this row block (built once, reused for both inputs).
    row = lax.broadcasted_iota(jnp.int32, (tm, n), 0) + i * tm
    col = lax.broadcasted_iota(jnp.int32, (tm, n), 1)
    diag = row == col

    neg_large = jnp.float32(jnp.finfo(jnp.float32).min)

    # Teacher: unnormalized masked-softmax weights; diagonal weight is exactly 0.
    t_max = jnp.max(jnp.where(diag, neg_large, t), axis=-1, keepdims=True)
    t_exp = jnp.where(diag, jnp.float32(0.0), jnp.exp(t - t_max))
    z_t = jnp.sum(t_exp, axis=-1, keepdims=True)           # (tm, 1)

    # Student: masked log-softmax.  Diagonal p values are irrelevant because
    # the matching teacher weight is 0, so no -inf/NaN ever enters the path.
    s_max = jnp.max(jnp.where(diag, neg_large, s), axis=-1, keepdims=True)
    s_shift = s - s_max
    s_exp = jnp.where(diag, jnp.float32(0.0), jnp.exp(s_shift))
    log_z_s = jnp.log(jnp.sum(s_exp, axis=-1, keepdims=True))
    p = s_shift - log_z_s                                    # (tm, n)

    # Per-row numerator: sum_j q_ij * p_ij = (1/Z_t_row) * sum_j t_exp_ij * p_ij
    row_num = jnp.sum(t_exp * p, axis=-1, keepdims=True) * pl.reciprocal(z_t)

    # Zero contributions from padded rows of an overhanging last block.
    row_valid = (lax.broadcasted_iota(jnp.int32, (tm, 1), 0) + i * tm) < n
    row_num = jnp.where(row_valid, row_num, jnp.float32(0.0))

    # Lane-dense (8, 128) writeback of this block's partial numerator.
    part_ref[...] = jnp.full((8, 128), jnp.sum(row_num), dtype=jnp.float32)


def _pick_row_tile(n):
    """Row-tile so one input tile is ~2 MiB f32; keeps double-buffered inputs +
    elementwise temporaries well under 32 MiB scoped VMEM on v5e/v6e/v7x."""
    tm = (2 * 1024 * 1024) // max(1, 4 * n)
    tm = int(max(8, min(512, tm)))
    tm = (tm // 8) * 8
    return n if tm >= n else tm


def listnet_loss(teacher_top1_sim_pred, student_top1_sim_pred, *, gamma_):
    assert teacher_top1_sim_pred.shape == student_top1_sim_pred.shape
    n = teacher_top1_sim_pred.shape[0]
    assert teacher_top1_sim_pred.shape == (n, n)

    tm = _pick_row_tile(n)
    g = pl.cdiv(n, tm)

    kernel = functools.partial(_listnet_rowblock_kernel, n=n)

    partials = pl.pallas_call(
        kernel,
        out_shape=jax.ShapeDtypeStruct((8 * g, 128), jnp.float32),
        grid=(g,),
        in_specs=[
            pl.BlockSpec((tm, n), lambda i: (i, 0)),
            pl.BlockSpec((tm, n), lambda i: (i, 0)),
        ],
        out_specs=pl.BlockSpec((8, 128), lambda i: (i, 0)),
        compiler_params=pltpu.CompilerParams(
            dimension_semantics=("parallel",),
            vmem_limit_bytes=32 * 1024 * 1024,
        ),
    )(teacher_top1_sim_pred, student_top1_sim_pred)

    # One partial numerator per grid step (broadcast over its (8,128) slab).
    block_sums = partials[::8, 0]
    # Denominator q.nansum() == n exactly (each masked softmax row sums to 1).
    return (-gamma_ / n) * jnp.sum(block_sums)


def _reference(teacher, student, gamma_):
    """Pure-JAX mirror of the PyTorch ListNet.forward (nansum semantics)."""
    n = teacher.shape[0]
    diag = jnp.eye(n, dtype=bool)
    t = jnp.where(diag, -jnp.inf, teacher)
    s = jnp.where(diag, -jnp.inf, student)
    q = jax.nn.softmax(t, axis=-1)
    p = jax.nn.log_softmax(s, axis=-1)
    qp = q * p
    qp = jnp.where(jnp.isnan(qp), 0.0, qp)
    qc = jnp.where(jnp.isnan(q), 0.0, q)
    return gamma_ * (-(jnp.sum(qp)) / jnp.sum(qc))


if __name__ == "__main__":
    # ListNet(tau, gamma_) hyperparameters -- deterministic, no learned weights.
    tau = 0.05
    gamma_ = 0.10

    N = 16  # batch size -> (N, N) top-1 similarity matrices
    key = jax.random.PRNGKey(0)
    k1, k2 = jax.random.split(key)
    # Simulated cosine-similarity matrices scaled by teacher/student temps
    # (forward() receives them already computed in the original model).
    teacher_top1_sim_pred = (
        jax.random.uniform(k1, (N, N), jnp.float32, minval=-1.0, maxval=1.0)
        / (tau / 2)
    )
    student_top1_sim_pred = (
        jax.random.uniform(k2, (N, N), jnp.float32, minval=-1.0, maxval=1.0)
        / tau
    )

    loss = listnet_loss(teacher_top1_sim_pred, student_top1_sim_pred, gamma_=gamma_)
    loss = jax.block_until_ready(loss)

    ref = _reference(teacher_top1_sim_pred, student_top1_sim_pred, gamma_)
    assert jnp.isfinite(loss), "loss is not finite"
    assert jnp.allclose(loss, ref, rtol=1e-5, atol=1e-6), (loss, ref)

    print("KERNEL_OK")
</pallas_src>

<mosaic_0001>
module attributes {stable_mosaic.version = 11 : i64} {
  func.func @_listnet_rowblock_kernel(%arg0: i32, %arg1: memref<16x16xf32, #tpu.memory_space<vmem>>, %arg2: memref<16x16xf32, #tpu.memory_space<vmem>>, %arg3: memref<8x128xf32, #tpu.memory_space<vmem>>) attributes {dimension_semantics = [#tpu.dimension_semantics<parallel>], iteration_bounds = array<i64: 1>, scalar_prefetch = 0 : i64, scratch_operands = 0 : i64, tpu.core_type = #tpu.core_type<tc>, window_params = [{transform_indices = @transform_0, window_bounds = array<i64: 16, 16>}, {transform_indices = @transform_1, window_bounds = array<i64: 16, 16>}, {transform_indices = @transform_2, window_bounds = array<i64: 8, 128>}]} {
    %c0 = arith.constant 0 : index
    %c0_0 = arith.constant 0 : index
    %0 = vector.load %arg1[%c0, %c0_0] : memref<16x16xf32, #tpu.memory_space<vmem>>, vector<16x16xf32>
    %c0_1 = arith.constant 0 : index
    %c0_2 = arith.constant 0 : index
    %1 = vector.load %arg2[%c0_1, %c0_2] : memref<16x16xf32, #tpu.memory_space<vmem>>, vector<16x16xf32>
    %2 = tpu.iota {dimensions = array<i32: 0>} : vector<16x16xi32>
    %c16_i32 = arith.constant 16 : i32
    %3 = arith.muli %arg0, %c16_i32 : i32
    %4 = vector.broadcast %3 : i32 to vector<16x16xi32>
    %5 = arith.addi %2, %4 : vector<16x16xi32>
    %6 = tpu.iota {dimensions = array<i32: 1>} : vector<16x16xi32>
    %7 = arith.cmpi eq, %5, %6 : vector<16x16xi32>
    %cst = arith.constant -3.40282347E+38 : f32
    %8 = vector.broadcast %cst : f32 to vector<16x16xf32>
    %9 = arith.select %7, %8, %0 : vector<16x16xi1>, vector<16x16xf32>
    %cst_3 = arith.constant dense<0xFF800000> : vector<16xf32>
    %10 = vector.multi_reduction <maximumf>, %9, %cst_3 [1] : vector<16x16xf32> to vector<16xf32>
    %11 = vector.shape_cast %10 : vector<16xf32> to vector<16x1xf32>
    %12 = vector.broadcast %11 : vector<16x1xf32> to vector<16x16xf32>
    %13 = arith.subf %0, %12 : vector<16x16xf32>
    %14 = math.exp %13 : vector<16x16xf32>
    %cst_4 = arith.constant 0.000000e+00 : f32
    %15 = vector.broadcast %cst_4 : f32 to vector<16x16xf32>
    %16 = arith.select %7, %15, %14 : vector<16x16xi1>, vector<16x16xf32>
    %cst_5 = arith.constant dense<0.000000e+00> : vector<16xf32>
    %17 = vector.multi_reduction <add>, %16, %cst_5 [1] : vector<16x16xf32> to vector<16xf32>
    %18 = vector.shape_cast %17 : vector<16xf32> to vector<16x1xf32>
    %cst_6 = arith.constant -3.40282347E+38 : f32
    %19 = vector.broadcast %cst_6 : f32 to vector<16x16xf32>
    %20 = arith.select %7, %19, %1 : vector<16x16xi1>, vector<16x16xf32>
    %cst_7 = arith.constant dense<0xFF800000> : vector<16xf32>
    %21 = vector.multi_reduction <maximumf>, %20, %cst_7 [1] : vector<16x16xf32> to vector<16xf32>
    %22 = vector.shape_cast %21 : vector<16xf32> to vector<16x1xf32>
    %23 = vector.broadcast %22 : vector<16x1xf32> to vector<16x16xf32>
    %24 = arith.subf %1, %23 : vector<16x16xf32>
    %25 = math.exp %24 : vector<16x16xf32>
    %cst_8 = arith.constant 0.000000e+00 : f32
    %26 = vector.broadcast %cst_8 : f32 to vector<16x16xf32>
    %27 = arith.select %7, %26, %25 : vector<16x16xi1>, vector<16x16xf32>
    %cst_9 = arith.constant dense<0.000000e+00> : vector<16xf32>
    %28 = vector.multi_reduction <add>, %27, %cst_9 [1] : vector<16x16xf32> to vector<16xf32>
    %29 = vector.shape_cast %28 : vector<16xf32> to vector<16x1xf32>
    %30 = math.log %29 : vector<16x1xf32>
    %31 = vector.broadcast %30 : vector<16x1xf32> to vector<16x16xf32>
    %32 = arith.subf %24, %31 : vector<16x16xf32>
    %33 = arith.mulf %16, %32 : vector<16x16xf32>
    %cst_10 = arith.constant dense<0.000000e+00> : vector<16xf32>
    %34 = vector.multi_reduction <add>, %33, %cst_10 [1] : vector<16x16xf32> to vector<16xf32>
    %35 = vector.shape_cast %34 : vector<16xf32> to vector<16x1xf32>
    %36 = tpu.reciprocal %18 : vector<16x1xf32> -> vector<16x1xf32>
    %37 = arith.mulf %35, %36 : vector<16x1xf32>
    %38 = tpu.iota {dimensions = array<i32: 0>} : vector<16x1xi32>
    %c16_i32_11 = arith.constant 16 : i32
    %39 = arith.muli %arg0, %c16_i32_11 : i32
    %40 = vector.broadcast %39 : i32 to vector<16x1xi32>
    %41 = arith.addi %38, %40 : vector<16x1xi32>
    %c16_i32_12 = arith.constant 16 : i32
    %42 = vector.broadcast %c16_i32_12 : i32 to vector<16x1xi32>
    %43 = arith.cmpi slt, %41, %42 : vector<16x1xi32>
    %cst_13 = arith.constant 0.000000e+00 : f32
    %44 = vector.broadcast %cst_13 : f32 to vector<16x1xf32>
    %45 = arith.select %43, %37, %44 : vector<16x1xi1>, vector<16x1xf32>
    %46 = vector.shape_cast %45 : vector<16x1xf32> to vector<1x16x1xf32>
    %cst_14 = arith.constant dense<0.000000e+00> : vector<1xf32>
    %47 = vector.multi_reduction <add>, %46, %cst_14 [1, 2] : vector<1x16x1xf32> to vector<1xf32>
    %48 = vector.shape_cast %47 : vector<1xf32> to vector<1x1x1xf32>
    %49 = vector.extract %48[0, 0, 0] : f32 from vector<1x1x1xf32>
    %50 = vector.broadcast %49 : f32 to vector<8x128xf32>
    %c0_15 = arith.constant 0 : index
    %c0_16 = arith.constant 0 : index
    %51 = vector.load %arg3[%c0_15, %c0_16] : memref<8x128xf32, #tpu.memory_space<vmem>>, vector<8x128xf32>
    tpu.vector_store %arg3[%c0_15, %c0_16], %50 {strides = array<i32>} : memref<8x128xf32, #tpu.memory_space<vmem>>, vector<8x128xf32>,
    return
  }
  func.func @transform_0(%arg0: i32) -> (i32, i32) {
    %c0_i32 = arith.constant 0 : i32
    %c0_i32_0 = arith.constant 0 : i32
    return %arg0, %c0_i32 : i32, i32
  }
  func.func @transform_1(%arg0: i32) -> (i32, i32) {
    %c0_i32 = arith.constant 0 : i32
    %c0_i32_0 = arith.constant 0 : i32
    return %arg0, %c0_i32 : i32, i32
  }
  func.func @transform_2(%arg0: i32) -> (i32, i32) {
    %c0_i32 = arith.constant 0 : i32
    %c0_i32_0 = arith.constant 0 : i32
    return %arg0, %c0_i32 : i32, i32
  }
}

</mosaic_0001>

<llo_original>
// kernel: tpu_custom_call.1
$region0: #{tpu_custom_call.1}
  #allocation0 [shape = 'u32[]', space=smem, size = 0x4, offset = 0x4, fixed_abs, tag = 'smem constant byte address 0x4 - core index']
  #allocation1 [shape = 'u32[144,128]{1,0:T(1,128)}', space=vmem, size = 0x12000, scoped, tag = 'internal scratch']
  %s0 = inlined_call_operand.hbm [shape: f32[16,16], index: 0, kind: input, shape index: {}]
  %s1 = inlined_call_operand.hbm [shape: f32[16,16], index: 1, kind: input, shape index: {}]
  %s2 = inlined_call_operand.hbm [shape: f32[8,128], index: 2, kind: output, shape index: {}]
  %s3 = sld [smem:[#allocation0]]
  $region26: #{tpu_custom_call.1} parent=0
    _
  %s5 = ssub.s32 1, %s3
  %s6 = scalar_select 0, %s5, %s3
  $region1: #{tpu_custom_call.1} parent=0
    #allocation2 [shape = 'u8[8192]{0}', space=vmem, size = 0x2000, scoped, tag = 'input window, operand 0, single buffered']
    #allocation3 [shape = 's32[1]{0}', space=sflag, size = 0x4, scoped, tag = 'scoped memory for tpu_custom_call.1']
    #allocation4 [shape = 's32[1]{0}', space=sflag, size = 0x4, scoped, tag = 'scoped memory for tpu_custom_call.1']
    #allocation5 [shape = 'u8[8192]{0}', space=vmem, size = 0x2000, scoped, tag = 'input window, operand 1, single buffered']
    #allocation6 [shape = 's32[1]{0}', space=sflag, size = 0x4, scoped, tag = 'scoped memory for tpu_custom_call.1']
    #allocation7 [shape = 'u8[4096]{0}', space=vmem, size = 0x1000, scoped, tag = 'output window, operand 0, single buffered']
    %7 = vsyncpa [#allocation3], 0
    %8 = vsyncpa [#allocation6], 0
    %9 = vsyncpa [#allocation4], 0
    // Predicated region
    $region2: #{tpu_custom_call.1} parent=1 // pred_check
      _
    $region3: #{tpu_custom_call.1} parent=1 // pred_check_branch
      %11 = sbr.rel (0) target = $region5
    $region4: #{tpu_custom_call.1} parent=1 // pred_region
      %s13 = ssub.s32 256, 256
      %14 = vsyncadd [#allocation3], %s13
      %s15 = sshll.u32 [#allocation2], 4
      %s16 = int_to_ptr.vmem [resolvable:$true] %s15
      %21 = dma.hbm_to_vmem [thread:$0]  %s0, 256, %s16, [#allocation3], 128, 128, 8
    $region5: #{tpu_custom_call.1} parent=1 // pred_fallthru
      _
    // Predicated region
    $region6: #{tpu_custom_call.1} parent=1 // pred_check
      _
    $region7: #{tpu_custom_call.1} parent=1 // pred_check_branch
      %23 = sbr.rel (0) target = $region9
    $region8: #{tpu_custom_call.1} parent=1 // pred_region
      %s25 = ssub.s32 256, 256
      %26 = vsyncadd [#allocation6], %s25
      %s27 = sshll.u32 [#allocation5], 4
      %s28 = int_to_ptr.vmem [resolvable:$true] %s27
      %33 = dma.hbm_to_vmem [thread:$0]  %s1, 256, %s28, [#allocation6], 128, 128, 8
    $region9: #{tpu_custom_call.1} parent=1 // pred_fallthru
      _
    // Predicated region
    $region10: #{tpu_custom_call.1} parent=1 // pred_check
      _
    $region11: #{tpu_custom_call.1} parent=1 // pred_check_branch
      %35 = sbr.rel (0) target = $region13
    $region12: #{tpu_custom_call.1} parent=1 // pred_region
      %36 = dma.done [#allocation3], 256
    $region13: #{tpu_custom_call.1} parent=1 // pred_fallthru
      _
    // Predicated region
    $region14: #{tpu_custom_call.1} parent=1 // pred_check
      _
    $region15: #{tpu_custom_call.1} parent=1 // pred_check_branch
      %38 = sbr.rel (0) target = $region17
    $region16: #{tpu_custom_call.1} parent=1 // pred_region
      %39 = dma.done [#allocation6], 256
    $region17: #{tpu_custom_call.1} parent=1 // pred_fallthru
      _
    %v40 = vld [vmem:[#allocation2] sm:$0xff]
    %v41 = vld [vmem:[#allocation2 + $0x8] sm:$0xff]
    %v42 = vld [vmem:[#allocation5] sm:$0xff]
    %v43 = vld [vmem:[#allocation5 + $0x8] sm:$0xff]
    %v44 = vlaneseq
    %v45 = vshrl.u32 %v44, 7
    %v46 = vadd.s32 %v45, 8
    %s47 = smul.u32 0, 16
    %v48 = vstv %s47
    %v49 = vadd.s32 %v45, %v48
    %v50 = vadd.s32 %v46, %v48
    %v51 = vlaneseq
    %v52 = vand.u32 %v51, 127
    %vm53 = vcmp.eq.s32.totalorder %v49, %v52
    %vm54 = vcmp.eq.s32.totalorder %v50, %v52
    %v55 = vsel %vm53, -3.4028235e+38, %v40
    %v56 = vsel %vm54, -3.4028235e+38, %v41
    %vm57 = vcmask 130048
    %v58 = vsel %vm57, %v55, -inf
    %59 = vmax.xlane.f32.xlu0 %v58
    %v60 = vpop.xlane.xlu0 %59
    %v61 = vsel %vm57, %v56, -inf
    %62 = vmax.xlane.f32.xlu0 %v61
    %v63 = vpop.xlane.xlu0 %62
    %v64 = vsub.f32 %v40, %v60
    %v65 = vsub.f32 %v41, %v63
    %v66 = vmul.f32 %v64, 1.442695
    %v67 = vpow.pop %v66
    %v68 = vmul.f32 %v65, 1.442695
    %v69 = vpow.pop %v68
    %v70 = vsel %vm53, 0.0, %v67
    %v71 = vsel %vm54, 0.0, %v69
    %v72 = vsel %vm57, %v70, 0.0
    %73 = vadd.xlane.f32.xlu0 %v72
    %v74 = vpop.xlane.xlu0 %73
    %v75 = vsel %vm57, %v71, 0.0
    %76 = vadd.xlane.f32.xlu0 %v75
    %v77 = vpop.xlane.xlu0 %76
    %v78 = vsel %vm53, -3.4028235e+38, %v42
    %v79 = vsel %vm54, -3.4028235e+38, %v43
    %v80 = vsel %vm57, %v78, -inf
    %81 = vmax.xlane.f32.xlu0 %v80
    %v82 = vpop.xlane.xlu0 %81
    %v83 = vsel %vm57, %v79, -inf
    %84 = vmax.xlane.f32.xlu0 %v83
    %v85 = vpop.xlane.xlu0 %84
    %v86 = vsub.f32 %v42, %v82
    %v87 = vsub.f32 %v43, %v85
    %v88 = vmul.f32 %v86, 1.442695
    %v89 = vpow.pop %v88
    %v90 = vmul.f32 %v87, 1.442695
    %v91 = vpow.pop %v90
    %v92 = vsel %vm53, 0.0, %v89
    %v93 = vsel %vm54, 0.0, %v91
    %v94 = vsel %vm57, %v92, 0.0
    %95 = vadd.xlane.f32.xlu0 %v94
    %v96 = vpop.xlane.xlu0 %95
    %v97 = vsel %vm57, %v93, 0.0
    %98 = vadd.xlane.f32.xlu0 %v97
    %v99 = vpop.xlane.xlu0 %98
    %v100 = vlog2.pop %v96
    %v101 = vmul.f32 %v100, 0.6931472
    %v102 = vlog2.pop %v99
    %v103 = vmul.f32 %v102, 0.6931472
    %v104 = vsub.f32 %v86, %v101
    %v105 = vsub.f32 %v87, %v103
    %v106 = vmul.f32 %v70, %v104
    %v107 = vmul.f32 %v71, %v105
    %v108 = vsel %vm57, %v106, 0.0
    %109 = vadd.xlane.f32.xlu0 %v108
    %v110 = vpop.xlane.xlu0 %109
    %v111 = vsel %vm57, %v107, 0.0
    %112 = vadd.xlane.f32.xlu0 %v111
    %v113 = vpop.xlane.xlu0 %112
    %v114 = vrcp.pop %v74
    %v115 = vrcp.pop %v77
    %v116 = vmul.f32 %v110, %v114
    %v117 = vmul.f32 %v113, %v115
    %vm118 = vcmp.lt.s32.totalorder %v49, 16
    %vm119 = vcmp.lt.s32.totalorder %v50, 16
    %v120 = vsel %vm118, %v116, 0.0
    %v121 = vsel %vm119, %v117, 0.0
    %vm122 = vcmask 7168
    %v123 = vsel %vm122, %v120, 0.0
    %v124 = vsel %vm122, %v121, 0.0
    %v125 = vadd.f32 %v123, %v124
    %126 = vadd.xlane.f32.xlu0 %v125
    %v127 = vpop.xlane.xlu0 %126
    %v128 = vrot.slane %v127, 4
    %v129 = vadd.f32 %v127, %v128
    %v130 = vrot.slane %v129, 2
    %v131 = vadd.f32 %v129, %v130
    %v132 = vrot.slane %v131, 1
    %v133 = vadd.f32 %v131, %v132
    %s134 = vtos %v133
    %v135 = vstv %s134
    %136 = vst [vmem:[#allocation7] sm:$0xff] %v135
    // Predicated region
    $region18: #{tpu_custom_call.1} parent=1 // pred_check
      _
    $region19: #{tpu_custom_call.1} parent=1 // pred_check_branch
      %138 = sbr.rel (0) target = $region21
    $region20: #{tpu_custom_call.1} parent=1 // pred_region
      %s140 = ssub.s32 128, 128
      %141 = vsyncadd [#allocation4], %s140
      %s143 = sshll.u32 [#allocation7], 4
      %s144 = int_to_ptr.vmem [resolvable:$true] %s143
      %146 = dma.vmem_to_hbm [thread:$0]  %s144, 128, %s2, [#allocation4]
    $region21: #{tpu_custom_call.1} parent=1 // pred_fallthru
      _
    // Predicated region
    $region22: #{tpu_custom_call.1} parent=1 // pred_check
      _
    $region23: #{tpu_custom_call.1} parent=1 // pred_check_branch
      %148 = sbr.rel (0) target = $region25
    $region24: #{tpu_custom_call.1} parent=1 // pred_region
      %149 = dma.done [#allocation4], 128
    $region25: #{tpu_custom_call.1} parent=1 // pred_fallthru
      _
    %150 = vsyncpa [#allocation3], 1
    %151 = vsyncpa [#allocation6], 1
    %152 = vsyncpa [#allocation4], 1

</llo_original>
